<compile_context>
chip_gen: v7x
topology: tpu7x:2x2x1
jax: 0.10.0
libtpu: 0.0.40
codegen_flags: <defaults>
</compile_context>

<pallas_src>
import functools

import jax
import jax.numpy as jnp
from jax.experimental import pallas as pl
from jax.experimental.pallas import tpu as pltpu

LANE = 128
SUB = 8


def _round_up(x, m):
    return (x + m - 1) // m * m


def _detect_num_tensorcores():
    """Best-effort TensorCores-per-device (2 on v7x megacore, 1 on v5e/v6e)."""
    candidates = ("num_cores", "core_count", "tensorcore_count", "num_tensorcores")
    try:
        dev = jax.devices()[0]
        for name in candidates:
            n = getattr(dev, name, None)
            if isinstance(n, int) and n > 0:
                return n
    except Exception:
        pass
    try:
        info = pltpu.get_tpu_info()
        for name in candidates:
            n = getattr(info, name, None)
            if isinstance(n, int) and n > 0:
                return n
    except Exception:
        pass
    return 1


def _default_tile_rows():
    """Per-generation tile sizing (rows of 128 lanes)."""
    try:
        kind = jax.devices()[0].device_kind.lower()
    except Exception:
        kind = ""
    if "v7" in kind:
        return 8192   # 4 MiB/input/buffer; amortizes per-step overhead at 3.2 TB/s
    return 4096       # 2 MiB/input/buffer; fits v5e/v6e comfortably


def _fold(x, tile_rows):
    """(tile_rows, LANE) f32 -> (SUB, LANE) partial sums, VALU-only.

    Split into 4 independent add chains (when divisible) so the fold exposes
    ILP across the 4 VALU slots and stays hidden under the block DMA.
    """
    if tile_rows >= 4 * SUB and tile_rows % (4 * SUB) == 0:
        q = tile_rows // 4
        p = [x[i * q:(i + 1) * q].reshape(q // SUB, SUB, LANE).sum(axis=0)
             for i in range(4)]
        return (p[0] + p[1]) + (p[2] + p[3])
    return x.reshape(tile_rows // SUB, SUB, LANE).sum(axis=0)


def _wbce_kernel(z_ref, t_ref, w_ref, loss_acc_ref, w_acc_ref, *,
                 rows, tile_rows, steps_per_core, num_full_blocks, needs_mask):
    c = pl.program_id(0)   # parallel (megacore) axis
    s = pl.program_id(1)   # sequential reduction axis

    @pl.when(s == 0)
    def _():
        loss_acc_ref[...] = jnp.zeros_like(loss_acc_ref)
        w_acc_ref[...] = jnp.zeros_like(w_acc_ref)

    # Native-dtype loads; cast on the VPU (free vs. an extra HBM pass).
    z = z_ref[...].astype(jnp.float32)
    t = t_ref[...].astype(jnp.float32)
    w = w_ref[...].astype(jnp.float32)

    # w * (clamp(z, 0) - z*t + log(1 + exp(-|z|)))  -- weight factored out.
    per = w * (jnp.maximum(z, 0.0) - z * t + jnp.log1p(jnp.exp(-jnp.abs(z))))

    if not needs_mask:
        # Statically known: every block of every step is fully in-bounds.
        loss_acc_ref[...] += _fold(per, tile_rows)[None]
        w_acc_ref[...] += _fold(w, tile_rows)[None]
        return

    # Logical (unclamped) block index. Blocks past the end of the data are
    # clamped in the index_map (re-reading the last valid block); the row mask
    # zeroes their contribution entirely.
    block = c * steps_per_core + s

    @pl.when(block < num_full_blocks)
    def _fast():
        # Interior blocks: no iota, no selects.
        loss_acc_ref[...] += _fold(per, tile_rows)[None]
        w_acc_ref[...] += _fold(w, tile_rows)[None]

    @pl.when(block >= num_full_blocks)
    def _slow():
        # Row-based tail mask. The select is applied AFTER the transcendental
        # chain so stale VMEM NaN/Inf in partial/clamped blocks cannot leak
        # (0 * NaN == NaN would otherwise poison the accumulator).
        row_ids = jax.lax.broadcasted_iota(jnp.int32, (tile_rows, LANE), 0)
        mask = (block * tile_rows + row_ids) < rows
        loss_acc_ref[...] += _fold(jnp.where(mask, per, 0.0), tile_rows)[None]
        w_acc_ref[...] += _fold(jnp.where(mask, w, 0.0), tile_rows)[None]


@functools.partial(jax.jit, static_argnames=("tile_rows", "num_splits"))
def _wbce_impl(logits, labels, weights, *, tile_rows, num_splits):
    total = logits.size

    z = logits.reshape(-1)
    t = labels.reshape(-1)
    w = weights.reshape(-1)

    rows = total // LANE
    rem = total - rows * LANE

    # <=127-element lane-alignment tail: tiny XLA reduction outside the kernel
    # (no full pad-copy of the three inputs for non-128-aligned sizes).
    if rem:
        zt = z[rows * LANE:].astype(jnp.float32)
        tt = t[rows * LANE:].astype(jnp.float32)
        wt = w[rows * LANE:].astype(jnp.float32)
        tail_loss = jnp.sum(
            wt * (jnp.maximum(zt, 0.0) - zt * tt + jnp.log1p(jnp.exp(-jnp.abs(zt)))))
        tail_w = jnp.sum(wt)
    else:
        tail_loss = jnp.zeros((), jnp.float32)
        tail_w = jnp.zeros((), jnp.float32)

    if rows == 0:
        return tail_loss / tail_w

    if rem:
        # Aligned prefix for the kernel (slice only in the unaligned case; the
        # aligned case below is a free reshape/bitcast).
        z = z[:rows * LANE]
        t = t[:rows * LANE]
        w = w[:rows * LANE]

    z2 = z.reshape(rows, LANE)
    t2 = t.reshape(rows, LANE)
    w2 = w.reshape(rows, LANE)

    # Block sizing: big blocks for the HBM roofline, clamped for small inputs,
    # sublane-aligned (multiple of 8).
    tile = min(tile_rows, _round_up(rows, SUB))
    tile = max(_round_up(tile, SUB), SUB)
    num_blocks = pl.cdiv(rows, tile)

    # Split the reduction across TensorCores (v7x megacore); skipped on 1-TC chips.
    split = num_splits if (num_splits > 1 and num_blocks >= num_splits) else 1
    steps = pl.cdiv(num_blocks, split)
    last_block = num_blocks - 1

    num_full_blocks = rows // tile                       # blocks with no partial rows
    needs_mask = (rows % tile != 0) or (split * steps != num_blocks)

    def in_map(c, s):
        # Clamp so we never request a block index past the array; the logical
        # block id inside the kernel zeroes the clamped repeats.
        return (jnp.minimum(c * steps + s, last_block), 0)

    in_spec = pl.BlockSpec((tile, LANE), in_map)
    acc_spec = pl.BlockSpec((1, SUB, LANE), lambda c, s: (c, 0, 0))

    bytes_in = (z2.size * z2.dtype.itemsize
                + t2.size * t2.dtype.itemsize
                + w2.size * w2.dtype.itemsize)
    cost = pl.CostEstimate(
        flops=8 * total,
        transcendentals=2 * total,
        bytes_accessed=bytes_in + 2 * split * SUB * LANE * 4,
    )

    # Explicit VMEM budget: 2 buffers x 3 inputs x tile block, plus headroom.
    bytes_per_step = 2 * tile * LANE * (z2.dtype.itemsize
                                        + t2.dtype.itemsize
                                        + w2.dtype.itemsize)
    vmem_limit = int(min(max(32 << 20, bytes_per_step + (4 << 20)), 60 << 20))

    kern = functools.partial(_wbce_kernel, rows=rows, tile_rows=tile,
                             steps_per_core=steps,
                             num_full_blocks=num_full_blocks,
                             needs_mask=needs_mask)

    loss_part, w_part = pl.pallas_call(
        kern,
        out_shape=(jax.ShapeDtypeStruct((split, SUB, LANE), jnp.float32),
                   jax.ShapeDtypeStruct((split, SUB, LANE), jnp.float32)),
        grid_spec=pltpu.PrefetchScalarGridSpec(
            num_scalar_prefetch=0,
            grid=(split, steps),
            in_specs=[in_spec, in_spec, in_spec],
            out_specs=[acc_spec, acc_spec],
        ),
        compiler_params=pltpu.CompilerParams(
            dimension_semantics=("parallel", "arbitrary"),
            vmem_limit_bytes=vmem_limit),
        cost_estimate=cost,
    )(z2, t2, w2)

    # Final cross-lane reduce + per-core combine + tail + divide (tiny, in XLA).
    return (loss_part.sum() + tail_loss) / (w_part.sum() + tail_w)


def weighted_bce_loss_2d(logits, labels, weights, *, tile_rows=None, num_splits=None):
    """Pallas implementation of WeightedBCELoss2d.forward."""
    if tile_rows is None:
        tile_rows = _default_tile_rows()
    if num_splits is None:
        num_splits = _detect_num_tensorcores()
    return _wbce_impl(logits, labels, weights,
                      tile_rows=int(tile_rows), num_splits=int(num_splits))


def _reference(logits, labels, weights):
    w = weights.reshape(-1).astype(jnp.float32)
    z = logits.reshape(-1).astype(jnp.float32)
    t = labels.reshape(-1).astype(jnp.float32)
    loss = w * jnp.maximum(z, 0.0) - w * z * t + w * jnp.log1p(jnp.exp(-jnp.abs(z)))
    return loss.sum() / w.sum()


if __name__ == "__main__":
    key = jax.random.PRNGKey(0)

    # Case 1: the module's typical NCHW conv-output shape (lane-aligned size).
    k1, k2, k3, k4, k5, k6 = jax.random.split(key, 6)
    B, C, H, W = 2, 4, 16, 16
    logits = jax.random.normal(k1, (B, C, H, W), dtype=jnp.float32) * 2.0
    labels = (jax.random.uniform(k2, (B, C, H, W)) > 0.5).astype(jnp.float32)
    weights = jax.random.uniform(k3, (B, C, H, W), dtype=jnp.float32) + 0.1

    out = jax.block_until_ready(weighted_bce_loss_2d(logits, labels, weights))
    ref = _reference(logits, labels, weights)
    assert jnp.allclose(out, ref, rtol=1e-5, atol=1e-5), (out, ref)

    # Case 2: odd (non-lane-aligned) shape with a small tile and forced 2-way
    # split to exercise the in-kernel row mask, the clamped-repeat path and
    # the XLA tail reduction.
    B2, C2, H2, W2 = 3, 2, 37, 53
    logits2 = jax.random.normal(k4, (B2, C2, H2, W2), dtype=jnp.float32) * 2.0
    labels2 = (jax.random.uniform(k5, (B2, C2, H2, W2)) > 0.5).astype(jnp.float32)
    weights2 = jax.random.uniform(k6, (B2, C2, H2, W2), dtype=jnp.float32) + 0.1

    out2 = jax.block_until_ready(
        weighted_bce_loss_2d(logits2, labels2, weights2, tile_rows=32, num_splits=2))
    ref2 = _reference(logits2, labels2, weights2)
    assert jnp.allclose(out2, ref2, rtol=1e-5, atol=1e-5), (out2, ref2)

    print("KERNEL_OK")
</pallas_src>

<mosaic_0001>
module attributes {stable_mosaic.version = 11 : i64} {
  func.func @_wbce_kernel(%arg0: i32, %arg1: i32, %arg2: memref<16x128xf32, #tpu.memory_space<vmem>>, %arg3: memref<16x128xf32, #tpu.memory_space<vmem>>, %arg4: memref<16x128xf32, #tpu.memory_space<vmem>>, %arg5: memref<1x8x128xf32, #tpu.memory_space<vmem>>, %arg6: memref<1x8x128xf32, #tpu.memory_space<vmem>>) attributes {dimension_semantics = [#tpu.dimension_semantics<parallel>, #tpu.dimension_semantics<arbitrary>], iteration_bounds = array<i64: 1, 1>, scalar_prefetch = 0 : i64, scratch_operands = 0 : i64, tpu.core_type = #tpu.core_type<tc>, window_params = [{transform_indices = @transform_0, window_bounds = array<i64: 16, 128>}, {transform_indices = @transform_1, window_bounds = array<i64: 16, 128>}, {transform_indices = @transform_2, window_bounds = array<i64: 16, 128>}, {transform_indices = @transform_3, window_bounds = array<i64: 1, 8, 128>}, {transform_indices = @transform_4, window_bounds = array<i64: 1, 8, 128>}]} {
    %c0_i32 = arith.constant 0 : i32
    %0 = arith.cmpi eq, %arg1, %c0_i32 : i32
    %1 = arith.extui %0 : i1 to i32
    %c0_i32_0 = arith.constant 0 : i32
    %2 = arith.cmpi ne, %1, %c0_i32_0 : i32
    scf.if %2 {
      %cst_21 = arith.constant 0.000000e+00 : f32
      %29 = vector.broadcast %cst_21 : f32 to vector<1x8x128xf32>
      %c0_22 = arith.constant 0 : index
      %c0_23 = arith.constant 0 : index
      %c0_24 = arith.constant 0 : index
      %30 = vector.load %arg5[%c0_22, %c0_23, %c0_24] : memref<1x8x128xf32, #tpu.memory_space<vmem>>, vector<1x8x128xf32>
      tpu.vector_store %arg5[%c0_22, %c0_23, %c0_24], %29 {strides = array<i32>} : memref<1x8x128xf32, #tpu.memory_space<vmem>>, vector<1x8x128xf32>,
      %cst_25 = arith.constant 0.000000e+00 : f32
      %31 = vector.broadcast %cst_25 : f32 to vector<1x8x128xf32>
      %c0_26 = arith.constant 0 : index
      %c0_27 = arith.constant 0 : index
      %c0_28 = arith.constant 0 : index
      %32 = vector.load %arg6[%c0_26, %c0_27, %c0_28] : memref<1x8x128xf32, #tpu.memory_space<vmem>>, vector<1x8x128xf32>
      tpu.vector_store %arg6[%c0_26, %c0_27, %c0_28], %31 {strides = array<i32>} : memref<1x8x128xf32, #tpu.memory_space<vmem>>, vector<1x8x128xf32>,
    } else {
    }
    %c0 = arith.constant 0 : index
    %c0_1 = arith.constant 0 : index
    %3 = vector.load %arg2[%c0, %c0_1] : memref<16x128xf32, #tpu.memory_space<vmem>>, vector<16x128xf32>
    %c0_2 = arith.constant 0 : index
    %c0_3 = arith.constant 0 : index
    %4 = vector.load %arg3[%c0_2, %c0_3] : memref<16x128xf32, #tpu.memory_space<vmem>>, vector<16x128xf32>
    %c0_4 = arith.constant 0 : index
    %c0_5 = arith.constant 0 : index
    %5 = vector.load %arg4[%c0_4, %c0_5] : memref<16x128xf32, #tpu.memory_space<vmem>>, vector<16x128xf32>
    %cst = arith.constant 0.000000e+00 : f32
    %6 = vector.broadcast %cst : f32 to vector<16x128xf32>
    %7 = arith.maximumf %3, %6 : vector<16x128xf32>
    %8 = arith.mulf %3, %4 : vector<16x128xf32>
    %9 = arith.subf %7, %8 : vector<16x128xf32>
    %10 = math.absf %3 : vector<16x128xf32>
    %cst_6 = arith.constant 0.000000e+00 : f32
    %11 = vector.broadcast %cst_6 : f32 to vector<16x128xf32>
    %12 = arith.subf %11, %10 : vector<16x128xf32>
    %13 = math.exp %12 : vector<16x128xf32>
    %14 = math.log1p %13 : vector<16x128xf32>
    %15 = arith.addf %9, %14 : vector<16x128xf32>
    %16 = arith.mulf %5, %15 : vector<16x128xf32>
    %c0_7 = arith.constant 0 : index
    %c0_8 = arith.constant 0 : index
    %c0_9 = arith.constant 0 : index
    %17 = vector.load %arg5[%c0_7, %c0_8, %c0_9] : memref<1x8x128xf32, #tpu.memory_space<vmem>>, vector<1x8x128xf32>
    %18 = vector.shape_cast %16 : vector<16x128xf32> to vector<2x8x128xf32>
    %cst_10 = arith.constant dense<0.000000e+00> : vector<8x128xf32>
    %19 = vector.multi_reduction <add>, %18, %cst_10 [0] : vector<2x8x128xf32> to vector<8x128xf32>
    %20 = vector.shape_cast %19 : vector<8x128xf32> to vector<1x8x128xf32>
    %21 = arith.addf %17, %20 : vector<1x8x128xf32>
    %c0_11 = arith.constant 0 : index
    %c0_12 = arith.constant 0 : index
    %c0_13 = arith.constant 0 : index
    %22 = vector.load %arg5[%c0_11, %c0_12, %c0_13] : memref<1x8x128xf32, #tpu.memory_space<vmem>>, vector<1x8x128xf32>
    tpu.vector_store %arg5[%c0_11, %c0_12, %c0_13], %21 {strides = array<i32>} : memref<1x8x128xf32, #tpu.memory_space<vmem>>, vector<1x8x128xf32>,
    %c0_14 = arith.constant 0 : index
    %c0_15 = arith.constant 0 : index
    %c0_16 = arith.constant 0 : index
    %23 = vector.load %arg6[%c0_14, %c0_15, %c0_16] : memref<1x8x128xf32, #tpu.memory_space<vmem>>, vector<1x8x128xf32>
    %24 = vector.shape_cast %5 : vector<16x128xf32> to vector<2x8x128xf32>
    %cst_17 = arith.constant dense<0.000000e+00> : vector<8x128xf32>
    %25 = vector.multi_reduction <add>, %24, %cst_17 [0] : vector<2x8x128xf32> to vector<8x128xf32>
    %26 = vector.shape_cast %25 : vector<8x128xf32> to vector<1x8x128xf32>
    %27 = arith.addf %23, %26 : vector<1x8x128xf32>
    %c0_18 = arith.constant 0 : index
    %c0_19 = arith.constant 0 : index
    %c0_20 = arith.constant 0 : index
    %28 = vector.load %arg6[%c0_18, %c0_19, %c0_20] : memref<1x8x128xf32, #tpu.memory_space<vmem>>, vector<1x8x128xf32>
    tpu.vector_store %arg6[%c0_18, %c0_19, %c0_20], %27 {strides = array<i32>} : memref<1x8x128xf32, #tpu.memory_space<vmem>>, vector<1x8x128xf32>,
    return
  }
  func.func @transform_0(%arg0: i32, %arg1: i32) -> (i32, i32) {
    %c1_i32 = arith.constant 1 : i32
    %0 = arith.muli %arg0, %c1_i32 : i32
    %1 = arith.addi %0, %arg1 : i32
    %c0_i32 = arith.constant 0 : i32
    %2 = arith.minsi %1, %c0_i32 : i32
    %c0_i32_0 = arith.constant 0 : i32
    %c0_i32_1 = arith.constant 0 : i32
    return %2, %c0_i32_0 : i32, i32
  }
  func.func @transform_1(%arg0: i32, %arg1: i32) -> (i32, i32) {
    %c1_i32 = arith.constant 1 : i32
    %0 = arith.muli %arg0, %c1_i32 : i32
    %1 = arith.addi %0, %arg1 : i32
    %c0_i32 = arith.constant 0 : i32
    %2 = arith.minsi %1, %c0_i32 : i32
    %c0_i32_0 = arith.constant 0 : i32
    %c0_i32_1 = arith.constant 0 : i32
    return %2, %c0_i32_0 : i32, i32
  }
  func.func @transform_2(%arg0: i32, %arg1: i32) -> (i32, i32) {
    %c1_i32 = arith.constant 1 : i32
    %0 = arith.muli %arg0, %c1_i32 : i32
    %1 = arith.addi %0, %arg1 : i32
    %c0_i32 = arith.constant 0 : i32
    %2 = arith.minsi %1, %c0_i32 : i32
    %c0_i32_0 = arith.constant 0 : i32
    %c0_i32_1 = arith.constant 0 : i32
    return %2, %c0_i32_0 : i32, i32
  }
  func.func @transform_3(%arg0: i32, %arg1: i32) -> (i32, i32, i32) {
    %c0_i32 = arith.constant 0 : i32
    %c0_i32_0 = arith.constant 0 : i32
    %c0_i32_1 = arith.constant 0 : i32
    return %arg0, %c0_i32, %c0_i32_0 : i32, i32, i32
  }
  func.func @transform_4(%arg0: i32, %arg1: i32) -> (i32, i32, i32) {
    %c0_i32 = arith.constant 0 : i32
    %c0_i32_0 = arith.constant 0 : i32
    %c0_i32_1 = arith.constant 0 : i32
    return %arg0, %c0_i32, %c0_i32_0 : i32, i32, i32
  }
}

</mosaic_0001>

<llo_original>
// kernel: _wbce_impl.1
$region0: #{_wbce_impl.1}
  #allocation0 [shape = 'u32[]', space=smem, size = 0x4, offset = 0x4, fixed_abs, tag = 'smem constant byte address 0x4 - core index']
  #allocation1 [shape = 'u32[144,128]{1,0:T(1,128)}', space=vmem, size = 0x12000, scoped, tag = 'internal scratch']
  %s0 = inlined_call_operand.vmem [shape: f32[16,128], index: 0, kind: input, shape index: {}]
  %s1 = inlined_call_operand.vmem [shape: f32[16,128], index: 1, kind: input, shape index: {}]
  %s2 = inlined_call_operand.vmem [shape: f32[16,128], index: 2, kind: input, shape index: {}]
  %s3 = inlined_call_operand.vmem [shape: f32[1,8,128], index: 3, kind: output, shape index: {0}]
  %s4 = inlined_call_operand.vmem [shape: f32[1,8,128], index: 4, kind: output, shape index: {1}]
  %5 = xla_tuple %s3, %s4
  %s6 = sld [smem:[#allocation0]]
  $region34: #{_wbce_impl.1} parent=0
    _
  %s8 = ssub.s32 1, %s6
  %s9 = scalar_select 0, %s8, %s6
  // Predicated region
  $region2: #{_wbce_impl.1} parent=0 // pred_check
    _
  $region3: #{_wbce_impl.1} parent=0 // pred_check_branch
    %11 = sbr.rel (0) target = $region5
  $region4: #{_wbce_impl.1} parent=0 // pred_region
    %s12 = sadd.s32 0, 0
    %p13 = scmp.lt.s32.totalorder %s12, 0
    %s14 = scalar_select %p13, %s12, 0
    %s15 = smul.u32 2, %s14
    %p16 = scmp.lt.s32.totalorder %s15, 1
    %s17 = scalar_select %p16, %s15, 1
    %s18 = smul.addr %s17, 8
    %s19 = scalar_lea.vmem %s0, %s18
    %s20 = sadd.s32 0, 0
    %p21 = scmp.lt.s32.totalorder %s20, 0
    %s22 = scalar_select %p21, %s20, 0
    %s23 = smul.u32 2, %s22
  $region5: #{_wbce_impl.1} parent=0 // pred_fallthru
    _
  // Predicated region
  $region6: #{_wbce_impl.1} parent=0 // pred_check
    _
  $region7: #{_wbce_impl.1} parent=0 // pred_check_branch
    %25 = sbr.rel (0) target = $region9
  $region8: #{_wbce_impl.1} parent=0 // pred_region
    %s26 = sadd.s32 0, 0
    %p27 = scmp.lt.s32.totalorder %s26, 0
    %s28 = scalar_select %p27, %s26, 0
    %s29 = smul.u32 2, %s28
    %p30 = scmp.lt.s32.totalorder %s29, 1
    %s31 = scalar_select %p30, %s29, 1
    %s32 = smul.addr %s31, 8
    %s33 = scalar_lea.vmem %s1, %s32
    %s34 = sadd.s32 0, 0
    %p35 = scmp.lt.s32.totalorder %s34, 0
    %s36 = scalar_select %p35, %s34, 0
    %s37 = smul.u32 2, %s36
  $region9: #{_wbce_impl.1} parent=0 // pred_fallthru
    _
  // Predicated region
  $region10: #{_wbce_impl.1} parent=0 // pred_check
    _
  $region11: #{_wbce_impl.1} parent=0 // pred_check_branch
    %39 = sbr.rel (0) target = $region13
  $region12: #{_wbce_impl.1} parent=0 // pred_region
    %s40 = sadd.s32 0, 0
    %p41 = scmp.lt.s32.totalorder %s40, 0
    %s42 = scalar_select %p41, %s40, 0
    %s43 = smul.u32 2, %s42
    %p44 = scmp.lt.s32.totalorder %s43, 1
    %s45 = scalar_select %p44, %s43, 1
    %s46 = smul.addr %s45, 8
    %s47 = scalar_lea.vmem %s2, %s46
    %s48 = sadd.s32 0, 0
    %p49 = scmp.lt.s32.totalorder %s48, 0
    %s50 = scalar_select %p49, %s48, 0
    %s51 = smul.u32 2, %s50
  $region13: #{_wbce_impl.1} parent=0 // pred_fallthru
    _
  %s52 = sadd.s32 0, 0
  %p53 = scmp.lt.s32.totalorder %s52, 0
  %s54 = scalar_select %p53, %s52, 0
  %s55 = smul.u32 2, %s54
  %p56 = scmp.lt.s32.totalorder %s55, 1
  %s57 = scalar_select %p56, %s55, 1
  %s58 = smul.addr %s57, 8
  %s59 = scalar_lea.vmem %s0, %s58
  %s60 = sadd.s32 0, 0
  %p61 = scmp.lt.s32.totalorder %s60, 0
  %s62 = scalar_select %p61, %s60, 0
  %s63 = smul.u32 2, %s62
  %p64 = scmp.lt.s32.totalorder %s63, 1
  %s65 = scalar_select %p64, %s63, 1
  %s66 = smul.addr %s65, 8
  %s67 = scalar_lea.vmem %s1, %s66
  %s68 = sadd.s32 0, 0
  %p69 = scmp.lt.s32.totalorder %s68, 0
  %s70 = scalar_select %p69, %s68, 0
  %s71 = smul.u32 2, %s70
  %p72 = scmp.lt.s32.totalorder %s71, 1
  %s73 = scalar_select %p72, %s71, 1
  %s74 = smul.addr %s73, 8
  %s75 = scalar_lea.vmem %s2, %s74
  %s76 = sadd.s32 0, 0
  %p77 = scmp.lt.s32.totalorder %s76, 0
  %s78 = scalar_select %p77, %s76, 0
  %s79 = smul.u32 2, %s78
  %p80 = scmp.lt.s32.totalorder %s79, 1
  %s81 = scalar_select %p80, %s79, 1
  %s82 = smul.addr %s81, 8
  %s83 = scalar_lea.vmem %s0, %s82
  %s84 = sadd.s32 0, 0
  %p85 = scmp.lt.s32.totalorder %s84, 0
  %s86 = scalar_select %p85, %s84, 0
  %s87 = smul.u32 2, %s86
  %s88 = sadd.s32 0, 0
  %p89 = scmp.lt.s32.totalorder %s88, 0
  %s90 = scalar_select %p89, %s88, 0
  %s91 = smul.u32 2, %s90
  %p92 = scmp.lt.s32.totalorder %s91, 1
  %s93 = scalar_select %p92, %s91, 1
  %s94 = smul.addr %s93, 8
  %s95 = scalar_lea.vmem %s1, %s94
  %s96 = sadd.s32 0, 0
  %p97 = scmp.lt.s32.totalorder %s96, 0
  %s98 = scalar_select %p97, %s96, 0
  %s99 = smul.u32 2, %s98
  %s100 = sadd.s32 0, 0
  %p101 = scmp.lt.s32.totalorder %s100, 0
  %s102 = scalar_select %p101, %s100, 0
  %s103 = smul.u32 2, %s102
  %p104 = scmp.lt.s32.totalorder %s103, 1
  %s105 = scalar_select %p104, %s103, 1
  %s106 = smul.addr %s105, 8
  %s107 = scalar_lea.vmem %s2, %s106
  %s108 = sadd.s32 0, 0
  %p109 = scmp.lt.s32.totalorder %s108, 0
  %s110 = scalar_select %p109, %s108, 0
  %s111 = smul.u32 2, %s110
  %p112 = scmp.eq.s32.totalorder 0, 0
  // Predicated region
  $region14: #{_wbce_impl.1} parent=0 // pred_check
    %p113 = pneg %p112
  $region15: #{_wbce_impl.1} parent=0 // pred_check_branch
    %115 = sbr.rel (%p113) target = $region17
  $region16: #{_wbce_impl.1} parent=0 // pred_region
    %116 = vst [vmem:[%s3] sm:$0xff] 0.0
    %117 = vst [vmem:[%s4] sm:$0xff] 0.0
  $region17: #{_wbce_impl.1} parent=0 // pred_fallthru
    _
  %v118 = vld [vmem:[%s83] sm:$0xff]
  %v119 = vld [vmem:[%s83 + $0x8] sm:$0xff]
  %v120 = vld [vmem:[%s95] sm:$0xff]
  %v121 = vld [vmem:[%s95 + $0x8] sm:$0xff]
  %v122 = vld [vmem:[%s107] sm:$0xff]
  %v123 = vld [vmem:[%s107 + $0x8] sm:$0xff]
  %v124 = vmax.f32 %v118, 0.0
  %v125 = vmax.f32 %v119, 0.0
  %v126 = vmul.f32 %v118, %v120
  %v127 = vmul.f32 %v119, %v121
  %v128 = vsub.f32 %v124, %v126
  %v129 = vsub.f32 %v125, %v127
  %v130 = vand.u32 2147483647, %v118
  %v131 = vand.u32 2147483647, %v119
  %v132 = vsub.f32 0.0, %v130
  %v133 = vsub.f32 0.0, %v131
  %v134 = vmul.f32 %v132, 1.442695
  %v135 = vpow.pop %v134
  %v136 = vmul.f32 %v133, 1.442695
  %v137 = vpow.pop %v136
  %v138 = vadd.f32 %v135, 1.0
  %v139 = vlog2.pop %v138
  %v140 = vmul.f32 %v139, 0.6931472
  %v141 = vmul.f32 -0.5, %v135
  %v142 = vadd.f32 %v141, 1.0
  %v143 = vmul.f32 %v142, %v135
  %v144 = vand.u32 2147483647, %v135
  %vm145 = vcmp.lt.f32.partialorder %v144, 0.0004427343
  %v146 = vsel %vm145, %v143, %v140
  %v147 = vadd.f32 %v137, 1.0
  %v148 = vlog2.pop %v147
  %v149 = vmul.f32 %v148, 0.6931472
  %v150 = vmul.f32 -0.5, %v137
  %v151 = vadd.f32 %v150, 1.0
  %v152 = vmul.f32 %v151, %v137
  %v153 = vand.u32 2147483647, %v137
  %vm154 = vcmp.lt.f32.partialorder %v153, 0.0004427343
  %v155 = vsel %vm154, %v152, %v149
  %v156 = vadd.f32 %v128, %v146
  %v157 = vadd.f32 %v129, %v155
  %v158 = vmul.f32 %v122, %v156
  %v159 = vmul.f32 %v123, %v157
  %v160 = vld [vmem:[%s3] sm:$0xff]
  %v161 = vadd.f32 %v158, %v159
  %v162 = vadd.f32 %v160, %v161
  %163 = vst [vmem:[%s3] sm:$0xff] %v162
  %v164 = vld [vmem:[%s4] sm:$0xff]
  %v165 = vadd.f32 %v122, %v123
  %v166 = vadd.f32 %v164, %v165
  %167 = vst [vmem:[%s4] sm:$0xff] %v166
  // Predicated region
  $region18: #{_wbce_impl.1} parent=0 // pred_check
    _
  $region19: #{_wbce_impl.1} parent=0 // pred_check_branch
    %169 = sbr.rel (0) target = $region21
  $region20: #{_wbce_impl.1} parent=0 // pred_region
    _
  $region21: #{_wbce_impl.1} parent=0 // pred_fallthru
    _
  // Predicated region
  $region22: #{_wbce_impl.1} parent=0 // pred_check
    _
  $region23: #{_wbce_impl.1} parent=0 // pred_check_branch
    %171 = sbr.rel (0) target = $region25
  $region24: #{_wbce_impl.1} parent=0 // pred_region
    _
  $region25: #{_wbce_impl.1} parent=0 // pred_fallthru
    _
  // Predicated region
  $region26: #{_wbce_impl.1} parent=0 // pred_check
    _
  $region27: #{_wbce_impl.1} parent=0 // pred_check_branch
    %173 = sbr.rel (0) target = $region29
  $region28: #{_wbce_impl.1} parent=0 // pred_region
    _
  $region29: #{_wbce_impl.1} parent=0 // pred_fallthru
    _
  // Predicated region
  $region30: #{_wbce_impl.1} parent=0 // pred_check
    _
  $region31: #{_wbce_impl.1} parent=0 // pred_check_branch
    %175 = sbr.rel (0) target = $region33
  $region32: #{_wbce_impl.1} parent=0 // pred_region
    _
  $region33: #{_wbce_impl.1} parent=0 // pred_fallthru
    _

</llo_original>
